<compile_context>
chip_gen: v7x
topology: tpu7x:2x2x1
jax: 0.10.0
libtpu: 0.0.40
codegen_flags: <defaults>
</compile_context>

<pallas_src>
import jax
import jax.numpy as jnp
import numpy as np
from jax.experimental import pallas as pl
from jax.experimental.pallas import tpu as pltpu


def _poly_recurrent_kernel(xu_ref, w_ref, e_mat_t_ref, log_e_t_ref, out_ref):
    # xu_ref:      (D, bt)    raw (un-normalized) inputs, time in lanes
    # w_ref:       (K, D)     coef / std            (normalization folded in)
    # e_mat_t_ref: (K, K)     E.T,    E[i,j]    = exp(logmat_eff[i,j] - rowmax_i)
    # log_e_t_ref: (K, K)     logE.T, logE[i,j] = logmat_eff[i,j] - rowmax_i
    # out_ref:     (K, K, bt) out[i, j, t]   (lane-dense stores, bt % 128 == 0)
    D = xu_ref.shape[0]
    K = w_ref.shape[0]

    xu = xu_ref[...]                # (D, bt)
    w = w_ref[...]                  # (K, D)
    e_mat_t = e_mat_t_ref[...]      # (K, K)
    log_e_t = log_e_t_ref[...]      # (K, K)

    # output[j, t] = sum_d w[j, d] * xu[d, t]  -- tiny contraction as D
    # broadcast FMAs over full (K, bt) slabs (VPU; MXU would be wasted here).
    out_rows = w[:, 0:1] * xu[0:1, :]                       # (K, bt)
    for d in range(1, D):
        out_rows = out_rows + w[:, d:d + 1] * xu[d:d + 1, :]

    # Shared shift + exp: K transcendentals per time step, lane-dense.
    m = jnp.max(out_rows, axis=0, keepdims=True)            # (1, bt)  XLU reduce
    d_shift = out_rows - m                                   # (K, bt), <= 0
    e = jnp.exp(d_shift)                                     # (K, bt)  EUP

    # Per logmat-row i: s_i = E[i, :] . e  (cross-sublane sum), one log,
    # then a full lane-dense (K, bt) slab store.
    for i in range(K):
        s_i = jnp.sum(e_mat_t[:, i:i + 1] * e, axis=0, keepdims=True)   # (1, bt)
        lse_shift = jnp.log(s_i)                                         # (1, bt)
        # out[i, j, t] = logE[i, j] + d[j, t] - log(s_i[t])
        out_ref[i, :, :] = log_e_t[:, i:i + 1] + d_shift - lse_shift


def poly_recurrent_forward(xu, mean, std, coef, logmat, *, block_t=8192):
    """xu: (T, D); mean/std: (D,); coef: (K, D); logmat: (K, K) -> (T, K, K)."""
    T, D = xu.shape
    K = logmat.shape[0]

    xu = xu.astype(jnp.float32)
    mean = mean.astype(jnp.float32)
    std = std.astype(jnp.float32)
    coef = coef.astype(jnp.float32)
    logmat = logmat.astype(jnp.float32)

    # Fold (x - mean)/std into the weights:
    #   ((x - mean)/std) @ coef.T == xu @ (coef/std).T + bias
    inv_std = 1.0 / std
    w = coef * inv_std[None, :]                        # (K, D)
    bias = -(mean * inv_std) @ coef.T                  # (K,)
    logmat_eff = logmat + bias[None, :]                # (K, K)

    # Fold exp(logmat_eff) (minus its per-row max, for stability) so the
    # kernel only needs K exps + K logs per time step.
    rowmax = jnp.max(logmat_eff, axis=-1, keepdims=True)     # (K, 1)
    log_e = logmat_eff - rowmax                               # (K, K), <= 0
    e_mat = jnp.exp(log_e)                                    # (K, K)
    # Transposed so the kernel slices row i of E / logE as a (K, 1) column.
    e_mat_t = e_mat.T                                         # (K, K)
    log_e_t = log_e.T                                         # (K, K)

    # --- tile-size selection: bt multiple of 128, padding waste < 128/tile ---
    block_t = max(128, int(block_t))
    n_tiles = max(1, (T + block_t - 1) // block_t)
    bt = ((T + n_tiles - 1) // n_tiles + 127) // 128 * 128
    t_pad = n_tiles * bt

    xu_t = xu.T                                        # (D, T): time into lanes
    if t_pad != T:
        xu_t = jnp.pad(xu_t, ((0, 0), (0, t_pad - T)))

    out3 = pl.pallas_call(
        _poly_recurrent_kernel,
        out_shape=jax.ShapeDtypeStruct((K, K, t_pad), jnp.float32),
        grid_spec=pltpu.PrefetchScalarGridSpec(
            num_scalar_prefetch=0,
            grid=(n_tiles,),
            in_specs=[
                pl.BlockSpec((D, bt), lambda t: (0, t)),   # xu tile (time in lanes)
                pl.BlockSpec((K, D), lambda t: (0, 0)),    # W = coef/std (resident)
                pl.BlockSpec((K, K), lambda t: (0, 0)),    # E.T          (resident)
                pl.BlockSpec((K, K), lambda t: (0, 0)),    # logE.T       (resident)
            ],
            out_specs=pl.BlockSpec((K, K, bt), lambda t: (0, 0, t)),
        ),
        compiler_params=pltpu.CompilerParams(
            dimension_semantics=("parallel",)),
    )(xu_t, w, e_mat_t, log_e_t)

    # Single transpose back to the reference (T, K, K) layout; the [:T]
    # de-pad slice fuses into the same copy.
    return jnp.transpose(out3, (2, 0, 1))[:T]


def _reference(xu, mean, std, coef, logmat):
    norm_xu = (xu - mean) / std
    output = norm_xu @ coef.T
    logtrans = logmat[None, :, :] + output[:, None, :]
    return logtrans - jax.scipy.special.logsumexp(logtrans, axis=-1, keepdims=True)


if __name__ == "__main__":
    # Small shapes consistent with the module's forward.
    nb_states = 5          # K
    dm_obs = 3
    dm_act = 1
    D = dm_obs + dm_act    # degree-1 features == normalized inputs
    K = nb_states

    key = jax.random.PRNGKey(0)
    k_xu, k_coef, k_mean, k_std = jax.random.split(key, 4)

    # deterministic parameter init mirroring __init__
    stdv = jnp.sqrt(jnp.asarray(1.0 / (dm_obs + dm_act + nb_states), jnp.float32))
    coef = stdv * jax.random.normal(k_coef, (K, D), dtype=jnp.float32)      # (K, nb_feat)
    logmat = jnp.log(jnp.ones((K, K), jnp.float32) / K)                     # row-uniform
    mean = jax.random.normal(k_mean, (D,), dtype=jnp.float32)               # norm['mean']
    std = jnp.abs(jax.random.normal(k_std, (D,), dtype=jnp.float32)) + 0.5  # norm['std']

    # (T, block_t): single ragged tile, tiny single tile, and a multi-step grid.
    for T, blk in ((300, 8192), (16, 8192), (1000, 256)):
        xu = jax.random.normal(jax.random.fold_in(k_xu, T), (T, D),
                               dtype=jnp.float32)
        out = poly_recurrent_forward(xu, mean, std, coef, logmat, block_t=blk)
        out = jax.block_until_ready(out)
        ref = _reference(xu, mean, std, coef, logmat)
        np.testing.assert_allclose(np.asarray(out), np.asarray(ref),
                                   atol=5e-5, rtol=5e-5)

    print("KERNEL_OK")
</pallas_src>

<mosaic_0001>
module attributes {stable_mosaic.version = 11 : i64} {
  func.func @_poly_recurrent_kernel(%arg0: i32, %arg1: memref<4x384xf32, #tpu.memory_space<vmem>>, %arg2: memref<5x4xf32, #tpu.memory_space<vmem>>, %arg3: memref<5x5xf32, #tpu.memory_space<vmem>>, %arg4: memref<5x5xf32, #tpu.memory_space<vmem>>, %arg5: memref<5x5x384xf32, #tpu.memory_space<vmem>>) attributes {dimension_semantics = [#tpu.dimension_semantics<parallel>], iteration_bounds = array<i64: 1>, scalar_prefetch = 0 : i64, scratch_operands = 0 : i64, tpu.core_type = #tpu.core_type<tc>, window_params = [{transform_indices = @transform_0, window_bounds = array<i64: 4, 384>}, {pipeline_mode = #tpu.pipeline_mode<synchronous>, transform_indices = @transform_1, window_bounds = array<i64: 5, 4>}, {pipeline_mode = #tpu.pipeline_mode<synchronous>, transform_indices = @transform_2, window_bounds = array<i64: 5, 5>}, {pipeline_mode = #tpu.pipeline_mode<synchronous>, transform_indices = @transform_3, window_bounds = array<i64: 5, 5>}, {transform_indices = @transform_4, window_bounds = array<i64: 5, 5, 384>}]} {
    %c0 = arith.constant 0 : index
    %c0_0 = arith.constant 0 : index
    %0 = vector.load %arg1[%c0, %c0_0] : memref<4x384xf32, #tpu.memory_space<vmem>>, vector<4x384xf32>
    %c0_1 = arith.constant 0 : index
    %c0_2 = arith.constant 0 : index
    %1 = vector.load %arg2[%c0_1, %c0_2] : memref<5x4xf32, #tpu.memory_space<vmem>>, vector<5x4xf32>
    %c0_3 = arith.constant 0 : index
    %c0_4 = arith.constant 0 : index
    %2 = vector.load %arg3[%c0_3, %c0_4] : memref<5x5xf32, #tpu.memory_space<vmem>>, vector<5x5xf32>
    %c0_5 = arith.constant 0 : index
    %c0_6 = arith.constant 0 : index
    %3 = vector.load %arg4[%c0_5, %c0_6] : memref<5x5xf32, #tpu.memory_space<vmem>>, vector<5x5xf32>
    %4 = vector.extract_strided_slice %1 {offsets = [0, 0], sizes = [5, 1], strides = [1, 1]} : vector<5x4xf32> to vector<5x1xf32>
    %5 = vector.extract_strided_slice %0 {offsets = [0, 0], sizes = [1, 384], strides = [1, 1]} : vector<4x384xf32> to vector<1x384xf32>
    %6 = vector.broadcast %4 : vector<5x1xf32> to vector<5x384xf32>
    %7 = vector.broadcast %5 : vector<1x384xf32> to vector<5x384xf32>
    %8 = arith.mulf %6, %7 : vector<5x384xf32>
    %9 = vector.extract_strided_slice %1 {offsets = [0, 1], sizes = [5, 1], strides = [1, 1]} : vector<5x4xf32> to vector<5x1xf32>
    %10 = vector.extract_strided_slice %0 {offsets = [1, 0], sizes = [1, 384], strides = [1, 1]} : vector<4x384xf32> to vector<1x384xf32>
    %11 = vector.broadcast %9 : vector<5x1xf32> to vector<5x384xf32>
    %12 = vector.broadcast %10 : vector<1x384xf32> to vector<5x384xf32>
    %13 = arith.mulf %11, %12 : vector<5x384xf32>
    %14 = arith.addf %8, %13 : vector<5x384xf32>
    %15 = vector.extract_strided_slice %1 {offsets = [0, 2], sizes = [5, 1], strides = [1, 1]} : vector<5x4xf32> to vector<5x1xf32>
    %16 = vector.extract_strided_slice %0 {offsets = [2, 0], sizes = [1, 384], strides = [1, 1]} : vector<4x384xf32> to vector<1x384xf32>
    %17 = vector.broadcast %15 : vector<5x1xf32> to vector<5x384xf32>
    %18 = vector.broadcast %16 : vector<1x384xf32> to vector<5x384xf32>
    %19 = arith.mulf %17, %18 : vector<5x384xf32>
    %20 = arith.addf %14, %19 : vector<5x384xf32>
    %21 = vector.extract_strided_slice %1 {offsets = [0, 3], sizes = [5, 1], strides = [1, 1]} : vector<5x4xf32> to vector<5x1xf32>
    %22 = vector.extract_strided_slice %0 {offsets = [3, 0], sizes = [1, 384], strides = [1, 1]} : vector<4x384xf32> to vector<1x384xf32>
    %23 = vector.broadcast %21 : vector<5x1xf32> to vector<5x384xf32>
    %24 = vector.broadcast %22 : vector<1x384xf32> to vector<5x384xf32>
    %25 = arith.mulf %23, %24 : vector<5x384xf32>
    %26 = arith.addf %20, %25 : vector<5x384xf32>
    %cst = arith.constant dense<0xFF800000> : vector<384xf32>
    %27 = vector.multi_reduction <maximumf>, %26, %cst [0] : vector<5x384xf32> to vector<384xf32>
    %28 = vector.shape_cast %27 : vector<384xf32> to vector<1x384xf32>
    %29 = vector.broadcast %28 : vector<1x384xf32> to vector<5x384xf32>
    %30 = arith.subf %26, %29 : vector<5x384xf32>
    %31 = math.exp %30 : vector<5x384xf32>
    %32 = vector.extract_strided_slice %2 {offsets = [0, 0], sizes = [5, 1], strides = [1, 1]} : vector<5x5xf32> to vector<5x1xf32>
    %33 = vector.broadcast %32 : vector<5x1xf32> to vector<5x384xf32>
    %34 = arith.mulf %33, %31 : vector<5x384xf32>
    %cst_7 = arith.constant dense<0.000000e+00> : vector<384xf32>
    %35 = vector.multi_reduction <add>, %34, %cst_7 [0] : vector<5x384xf32> to vector<384xf32>
    %36 = vector.shape_cast %35 : vector<384xf32> to vector<1x384xf32>
    %37 = math.log %36 : vector<1x384xf32>
    %38 = vector.extract_strided_slice %3 {offsets = [0, 0], sizes = [5, 1], strides = [1, 1]} : vector<5x5xf32> to vector<5x1xf32>
    %39 = vector.broadcast %38 : vector<5x1xf32> to vector<5x384xf32>
    %40 = arith.addf %39, %30 : vector<5x384xf32>
    %41 = vector.broadcast %37 : vector<1x384xf32> to vector<5x384xf32>
    %42 = arith.subf %40, %41 : vector<5x384xf32>
    %c0_8 = arith.constant 0 : index
    %c0_9 = arith.constant 0 : index
    %c0_10 = arith.constant 0 : index
    %43 = vector.load %arg5[%c0_8, %c0_9, %c0_10] : memref<5x5x384xf32, #tpu.memory_space<vmem>>, vector<1x5x384xf32>
    %44 = vector.shape_cast %43 : vector<1x5x384xf32> to vector<5x384xf32>
    %45 = vector.shape_cast %42 : vector<5x384xf32> to vector<1x5x384xf32>
    tpu.vector_store %arg5[%c0_8, %c0_9, %c0_10], %45 {strides = array<i32>} : memref<5x5x384xf32, #tpu.memory_space<vmem>>, vector<1x5x384xf32>,
    %46 = vector.extract_strided_slice %2 {offsets = [0, 1], sizes = [5, 1], strides = [1, 1]} : vector<5x5xf32> to vector<5x1xf32>
    %47 = vector.broadcast %46 : vector<5x1xf32> to vector<5x384xf32>
    %48 = arith.mulf %47, %31 : vector<5x384xf32>
    %cst_11 = arith.constant dense<0.000000e+00> : vector<384xf32>
    %49 = vector.multi_reduction <add>, %48, %cst_11 [0] : vector<5x384xf32> to vector<384xf32>
    %50 = vector.shape_cast %49 : vector<384xf32> to vector<1x384xf32>
    %51 = math.log %50 : vector<1x384xf32>
    %52 = vector.extract_strided_slice %3 {offsets = [0, 1], sizes = [5, 1], strides = [1, 1]} : vector<5x5xf32> to vector<5x1xf32>
    %53 = vector.broadcast %52 : vector<5x1xf32> to vector<5x384xf32>
    %54 = arith.addf %53, %30 : vector<5x384xf32>
    %55 = vector.broadcast %51 : vector<1x384xf32> to vector<5x384xf32>
    %56 = arith.subf %54, %55 : vector<5x384xf32>
    %c1 = arith.constant 1 : index
    %c0_12 = arith.constant 0 : index
    %c0_13 = arith.constant 0 : index
    %57 = vector.load %arg5[%c1, %c0_12, %c0_13] : memref<5x5x384xf32, #tpu.memory_space<vmem>>, vector<1x5x384xf32>
    %58 = vector.shape_cast %57 : vector<1x5x384xf32> to vector<5x384xf32>
    %59 = vector.shape_cast %56 : vector<5x384xf32> to vector<1x5x384xf32>
    tpu.vector_store %arg5[%c1, %c0_12, %c0_13], %59 {strides = array<i32>} : memref<5x5x384xf32, #tpu.memory_space<vmem>>, vector<1x5x384xf32>,
    %60 = vector.extract_strided_slice %2 {offsets = [0, 2], sizes = [5, 1], strides = [1, 1]} : vector<5x5xf32> to vector<5x1xf32>
    %61 = vector.broadcast %60 : vector<5x1xf32> to vector<5x384xf32>
    %62 = arith.mulf %61, %31 : vector<5x384xf32>
    %cst_14 = arith.constant dense<0.000000e+00> : vector<384xf32>
    %63 = vector.multi_reduction <add>, %62, %cst_14 [0] : vector<5x384xf32> to vector<384xf32>
    %64 = vector.shape_cast %63 : vector<384xf32> to vector<1x384xf32>
    %65 = math.log %64 : vector<1x384xf32>
    %66 = vector.extract_strided_slice %3 {offsets = [0, 2], sizes = [5, 1], strides = [1, 1]} : vector<5x5xf32> to vector<5x1xf32>
    %67 = vector.broadcast %66 : vector<5x1xf32> to vector<5x384xf32>
    %68 = arith.addf %67, %30 : vector<5x384xf32>
    %69 = vector.broadcast %65 : vector<1x384xf32> to vector<5x384xf32>
    %70 = arith.subf %68, %69 : vector<5x384xf32>
    %c2 = arith.constant 2 : index
    %c0_15 = arith.constant 0 : index
    %c0_16 = arith.constant 0 : index
    %71 = vector.load %arg5[%c2, %c0_15, %c0_16] : memref<5x5x384xf32, #tpu.memory_space<vmem>>, vector<1x5x384xf32>
    %72 = vector.shape_cast %71 : vector<1x5x384xf32> to vector<5x384xf32>
    %73 = vector.shape_cast %70 : vector<5x384xf32> to vector<1x5x384xf32>
    tpu.vector_store %arg5[%c2, %c0_15, %c0_16], %73 {strides = array<i32>} : memref<5x5x384xf32, #tpu.memory_space<vmem>>, vector<1x5x384xf32>,
    %74 = vector.extract_strided_slice %2 {offsets = [0, 3], sizes = [5, 1], strides = [1, 1]} : vector<5x5xf32> to vector<5x1xf32>
    %75 = vector.broadcast %74 : vector<5x1xf32> to vector<5x384xf32>
    %76 = arith.mulf %75, %31 : vector<5x384xf32>
    %cst_17 = arith.constant dense<0.000000e+00> : vector<384xf32>
    %77 = vector.multi_reduction <add>, %76, %cst_17 [0] : vector<5x384xf32> to vector<384xf32>
    %78 = vector.shape_cast %77 : vector<384xf32> to vector<1x384xf32>
    %79 = math.log %78 : vector<1x384xf32>
    %80 = vector.extract_strided_slice %3 {offsets = [0, 3], sizes = [5, 1], strides = [1, 1]} : vector<5x5xf32> to vector<5x1xf32>
    %81 = vector.broadcast %80 : vector<5x1xf32> to vector<5x384xf32>
    %82 = arith.addf %81, %30 : vector<5x384xf32>
    %83 = vector.broadcast %79 : vector<1x384xf32> to vector<5x384xf32>
    %84 = arith.subf %82, %83 : vector<5x384xf32>
    %c3 = arith.constant 3 : index
    %c0_18 = arith.constant 0 : index
    %c0_19 = arith.constant 0 : index
    %85 = vector.load %arg5[%c3, %c0_18, %c0_19] : memref<5x5x384xf32, #tpu.memory_space<vmem>>, vector<1x5x384xf32>
    %86 = vector.shape_cast %85 : vector<1x5x384xf32> to vector<5x384xf32>
    %87 = vector.shape_cast %84 : vector<5x384xf32> to vector<1x5x384xf32>
    tpu.vector_store %arg5[%c3, %c0_18, %c0_19], %87 {strides = array<i32>} : memref<5x5x384xf32, #tpu.memory_space<vmem>>, vector<1x5x384xf32>,
    %88 = vector.extract_strided_slice %2 {offsets = [0, 4], sizes = [5, 1], strides = [1, 1]} : vector<5x5xf32> to vector<5x1xf32>
    %89 = vector.broadcast %88 : vector<5x1xf32> to vector<5x384xf32>
    %90 = arith.mulf %89, %31 : vector<5x384xf32>
    %cst_20 = arith.constant dense<0.000000e+00> : vector<384xf32>
    %91 = vector.multi_reduction <add>, %90, %cst_20 [0] : vector<5x384xf32> to vector<384xf32>
    %92 = vector.shape_cast %91 : vector<384xf32> to vector<1x384xf32>
    %93 = math.log %92 : vector<1x384xf32>
    %94 = vector.extract_strided_slice %3 {offsets = [0, 4], sizes = [5, 1], strides = [1, 1]} : vector<5x5xf32> to vector<5x1xf32>
    %95 = vector.broadcast %94 : vector<5x1xf32> to vector<5x384xf32>
    %96 = arith.addf %95, %30 : vector<5x384xf32>
    %97 = vector.broadcast %93 : vector<1x384xf32> to vector<5x384xf32>
    %98 = arith.subf %96, %97 : vector<5x384xf32>
    %c4 = arith.constant 4 : index
    %c0_21 = arith.constant 0 : index
    %c0_22 = arith.constant 0 : index
    %99 = vector.load %arg5[%c4, %c0_21, %c0_22] : memref<5x5x384xf32, #tpu.memory_space<vmem>>, vector<1x5x384xf32>
    %100 = vector.shape_cast %99 : vector<1x5x384xf32> to vector<5x384xf32>
    %101 = vector.shape_cast %98 : vector<5x384xf32> to vector<1x5x384xf32>
    tpu.vector_store %arg5[%c4, %c0_21, %c0_22], %101 {strides = array<i32>} : memref<5x5x384xf32, #tpu.memory_space<vmem>>, vector<1x5x384xf32>,
    return
  }
  func.func @transform_0(%arg0: i32) -> (i32, i32) {
    %c0_i32 = arith.constant 0 : i32
    %c0_i32_0 = arith.constant 0 : i32
    return %c0_i32, %arg0 : i32, i32
  }
  func.func @transform_1(%arg0: i32) -> (i32, i32) {
    %c0_i32 = arith.constant 0 : i32
    %c0_i32_0 = arith.constant 0 : i32
    %c0_i32_1 = arith.constant 0 : i32
    return %c0_i32, %c0_i32_0 : i32, i32
  }
  func.func @transform_2(%arg0: i32) -> (i32, i32) {
    %c0_i32 = arith.constant 0 : i32
    %c0_i32_0 = arith.constant 0 : i32
    %c0_i32_1 = arith.constant 0 : i32
    return %c0_i32, %c0_i32_0 : i32, i32
  }
  func.func @transform_3(%arg0: i32) -> (i32, i32) {
    %c0_i32 = arith.constant 0 : i32
    %c0_i32_0 = arith.constant 0 : i32
    %c0_i32_1 = arith.constant 0 : i32
    return %c0_i32, %c0_i32_0 : i32, i32
  }
  func.func @transform_4(%arg0: i32) -> (i32, i32, i32) {
    %c0_i32 = arith.constant 0 : i32
    %c0_i32_0 = arith.constant 0 : i32
    %c0_i32_1 = arith.constant 0 : i32
    return %c0_i32, %c0_i32_0, %arg0 : i32, i32, i32
  }
}

</mosaic_0001>

<llo_original>
// kernel: tpu_custom_call.1
$region0: #{tpu_custom_call.1}
  #allocation0 [shape = 'u32[]', space=smem, size = 0x4, offset = 0x4, fixed_abs, tag = 'smem constant byte address 0x4 - core index']
  #allocation1 [shape = 'u32[144,128]{1,0:T(1,128)}', space=vmem, size = 0x12000, scoped, tag = 'internal scratch']
  %s0 = inlined_call_operand.vmem [shape: f32[4,384], index: 0, kind: input, shape index: {}]
  %s1 = inlined_call_operand.vmem [shape: f32[5,4], index: 1, kind: input, shape index: {}]
  %s2 = inlined_call_operand.hbm [shape: f32[5,5], index: 2, kind: input, shape index: {}]
  %s3 = inlined_call_operand.vmem [shape: f32[5,5], index: 3, kind: input, shape index: {}]
  %s4 = inlined_call_operand.hbm [shape: f32[5,5,384], index: 4, kind: output, shape index: {}]
  %s5 = sld [smem:[#allocation0]]
  $region30: #{tpu_custom_call.1} parent=0
    _
  %s7 = ssub.s32 1, %s5
  %s8 = scalar_select 0, %s7, %s5
  $region1: #{tpu_custom_call.1} parent=0
    #allocation2 [shape = 'u8[4096]{0}', space=vmem, size = 0x1000, scoped, tag = 'input window, operand 2, single buffered']
    #allocation3 [shape = 's32[1]{0}', space=sflag, size = 0x4, scoped, tag = 'scoped memory for tpu_custom_call.1']
    #allocation4 [shape = 's32[1]{0}', space=sflag, size = 0x4, scoped, tag = 'scoped memory for tpu_custom_call.1']
    #allocation5 [shape = 'u8[61440]{0}', space=vmem, size = 0xf000, scoped, tag = 'output window, operand 0, single buffered']
    %9 = vsyncpa [#allocation3], 0
    %10 = vsyncpa [#allocation4], 0
    // Predicated region
    $region2: #{tpu_custom_call.1} parent=1 // pred_check
      _
    $region3: #{tpu_custom_call.1} parent=1 // pred_check_branch
      %12 = sbr.rel (0) target = $region5
    $region4: #{tpu_custom_call.1} parent=1 // pred_region
      _
    $region5: #{tpu_custom_call.1} parent=1 // pred_fallthru
      _
    // Predicated region
    $region6: #{tpu_custom_call.1} parent=1 // pred_check
      _
    $region7: #{tpu_custom_call.1} parent=1 // pred_check_branch
      %14 = sbr.rel (0) target = $region9
    $region8: #{tpu_custom_call.1} parent=1 // pred_region
      _
    $region9: #{tpu_custom_call.1} parent=1 // pred_fallthru
      _
    // Predicated region
    $region10: #{tpu_custom_call.1} parent=1 // pred_check
      _
    $region11: #{tpu_custom_call.1} parent=1 // pred_check_branch
      %16 = sbr.rel (0) target = $region13
    $region12: #{tpu_custom_call.1} parent=1 // pred_region
      %s18 = ssub.s32 128, 128
      %19 = vsyncadd [#allocation3], %s18
      %s21 = sshll.u32 [#allocation2], 4
      %s22 = int_to_ptr.vmem [resolvable:$true] %s21
      %24 = dma.hbm_to_vmem [thread:$0]  %s2, 128, %s22, [#allocation3]
    $region13: #{tpu_custom_call.1} parent=1 // pred_fallthru
      _
    // Predicated region
    $region14: #{tpu_custom_call.1} parent=1 // pred_check
      _
    $region15: #{tpu_custom_call.1} parent=1 // pred_check_branch
      %26 = sbr.rel (0) target = $region17
    $region16: #{tpu_custom_call.1} parent=1 // pred_region
      _
    $region17: #{tpu_custom_call.1} parent=1 // pred_fallthru
      _
    // Predicated region
    $region18: #{tpu_custom_call.1} parent=1 // pred_check
      _
    $region19: #{tpu_custom_call.1} parent=1 // pred_check_branch
      %28 = sbr.rel (0) target = $region21
    $region20: #{tpu_custom_call.1} parent=1 // pred_region
      %29 = dma.done [#allocation3], 128
    $region21: #{tpu_custom_call.1} parent=1 // pred_fallthru
      _
    %v30 = vld [vmem:[%s0] sm:$0xff]
    %v31 = vld [vmem:[%s0 + $0x8] sm:$0xf]
    %v32 = vld [vmem:[%s1] sm:$0x1f]
    %v33 = vld [vmem:[#allocation2] sm:$0x1f]
    %v34 = vld [vmem:[%s3] sm:$0x1f]
    %36 = vset.pattern.permute.xlu0 0
    %37 = vperm.xlu0 %36, %v32
    %v38 = vpop.permute.xlu0 %37
    %v42 = vlaneseq
    %v43 = vshrl.u32 %v42, 7
    %v44 = vsub.s32 0, %v43
    %v45 = vrot.slane %v30, %v44
    %v46 = vlaneseq
    %v47 = vshrl.u32 %v46, 7
    %v48 = vsub.s32 4, %v47
    %v49 = vrot.slane %v30, %v48
    %v50 = vlaneseq
    %v51 = vshrl.u32 %v50, 7
    %v52 = vsub.s32 0, %v51
    %v53 = vrot.slane %v31, %v52
    %v57 = vlaneseq
    %v58 = vshrl.u32 %v57, 7
    %v59 = vsub.s32 0, %v58
    %v60 = vrot.slane %v45, %v59
    %v61 = vlaneseq
    %v62 = vshrl.u32 %v61, 7
    %v63 = vsub.s32 0, %v62
    %v64 = vrot.slane %v49, %v63
    %v65 = vlaneseq
    %v66 = vshrl.u32 %v65, 7
    %v67 = vsub.s32 0, %v66
    %v68 = vrot.slane %v53, %v67
    %v69 = vmul.f32 %v38, %v60
    %v70 = vmul.f32 %v38, %v64
    %v71 = vmul.f32 %v38, %v68
    %72 = vset.pattern.permute.xlu0 1
    %73 = vperm.xlu0 %72, %v32
    %v74 = vpop.permute.xlu0 %73
    %v76 = vlaneseq
    %v77 = vshrl.u32 %v76, 7
    %v78 = vsub.s32 1, %v77
    %v79 = vrot.slane %v30, %v78
    %v80 = vlaneseq
    %v81 = vshrl.u32 %v80, 7
    %v82 = vsub.s32 5, %v81
    %v83 = vrot.slane %v30, %v82
    %v84 = vlaneseq
    %v85 = vshrl.u32 %v84, 7
    %v86 = vsub.s32 1, %v85
    %v87 = vrot.slane %v31, %v86
    %v91 = vlaneseq
    %v92 = vshrl.u32 %v91, 7
    %v93 = vsub.s32 1, %v92
    %v94 = vrot.slane %v79, %v93
    %v95 = vlaneseq
    %v96 = vshrl.u32 %v95, 7
    %v97 = vsub.s32 1, %v96
    %v98 = vrot.slane %v83, %v97
    %v99 = vlaneseq
    %v100 = vshrl.u32 %v99, 7
    %v101 = vsub.s32 1, %v100
    %v102 = vrot.slane %v87, %v101
    %v103 = vmul.f32 %v74, %v94
    %v104 = vmul.f32 %v74, %v98
    %v105 = vmul.f32 %v74, %v102
    %v106 = vadd.f32 %v69, %v103
    %v107 = vadd.f32 %v70, %v104
    %v108 = vadd.f32 %v71, %v105
    %109 = vset.pattern.permute.xlu0 2
    %110 = vperm.xlu0 %109, %v32
    %v111 = vpop.permute.xlu0 %110
    %v113 = vlaneseq
    %v114 = vshrl.u32 %v113, 7
    %v115 = vsub.s32 2, %v114
    %v116 = vrot.slane %v30, %v115
    %v117 = vlaneseq
    %v118 = vshrl.u32 %v117, 7
    %v119 = vsub.s32 6, %v118
    %v120 = vrot.slane %v30, %v119
    %v121 = vlaneseq
    %v122 = vshrl.u32 %v121, 7
    %v123 = vsub.s32 2, %v122
    %v124 = vrot.slane %v31, %v123
    %v128 = vlaneseq
    %v129 = vshrl.u32 %v128, 7
    %v130 = vsub.s32 2, %v129
    %v131 = vrot.slane %v116, %v130
    %v132 = vlaneseq
    %v133 = vshrl.u32 %v132, 7
    %v134 = vsub.s32 2, %v133
    %v135 = vrot.slane %v120, %v134
    %v136 = vlaneseq
    %v137 = vshrl.u32 %v136, 7
    %v138 = vsub.s32 2, %v137
    %v139 = vrot.slane %v124, %v138
    %v140 = vmul.f32 %v111, %v131
    %v141 = vmul.f32 %v111, %v135
    %v142 = vmul.f32 %v111, %v139
    %v143 = vadd.f32 %v106, %v140
    %v144 = vadd.f32 %v107, %v141
    %v145 = vadd.f32 %v108, %v142
    %146 = vset.pattern.permute.xlu0 3
    %147 = vperm.xlu0 %146, %v32
    %v148 = vpop.permute.xlu0 %147
    %v150 = vlaneseq
    %v151 = vshrl.u32 %v150, 7
    %v152 = vsub.s32 3, %v151
    %v153 = vrot.slane %v30, %v152
    %v154 = vlaneseq
    %v155 = vshrl.u32 %v154, 7
    %v156 = vsub.s32 7, %v155
    %v157 = vrot.slane %v30, %v156
    %v158 = vlaneseq
    %v159 = vshrl.u32 %v158, 7
    %v160 = vsub.s32 3, %v159
    %v161 = vrot.slane %v31, %v160
    %v165 = vlaneseq
    %v166 = vshrl.u32 %v165, 7
    %v167 = vsub.s32 3, %v166
    %v168 = vrot.slane %v153, %v167
    %v169 = vlaneseq
    %v170 = vshrl.u32 %v169, 7
    %v171 = vsub.s32 3, %v170
    %v172 = vrot.slane %v157, %v171
    %v173 = vlaneseq
    %v174 = vshrl.u32 %v173, 7
    %v175 = vsub.s32 3, %v174
    %v176 = vrot.slane %v161, %v175
    %v177 = vmul.f32 %v148, %v168
    %v178 = vmul.f32 %v148, %v172
    %v179 = vmul.f32 %v148, %v176
    %v180 = vadd.f32 %v143, %v177
    %v181 = vadd.f32 %v144, %v178
    %v182 = vadd.f32 %v145, %v179
    %vm183 = vcmask 1044480
    %v184 = vsel %vm183, %v180, -inf
    %v185 = vrot.slane %v184, 4
    %v186 = vmax.f32 %v184, %v185
    %v187 = vrot.slane %v186, 2
    %v188 = vmax.f32 %v186, %v187
    %v189 = vrot.slane %v188, 1
    %v190 = vmax.f32 %v188, %v189
    %v191 = vsel %vm183, %v181, -inf
    %v192 = vrot.slane %v191, 4
    %v193 = vmax.f32 %v191, %v192
    %v194 = vrot.slane %v193, 2
    %v195 = vmax.f32 %v193, %v194
    %v196 = vrot.slane %v195, 1
    %v197 = vmax.f32 %v195, %v196
    %v198 = vsel %vm183, %v182, -inf
    %v199 = vrot.slane %v198, 4
    %v200 = vmax.f32 %v198, %v199
    %v201 = vrot.slane %v200, 2
    %v202 = vmax.f32 %v200, %v201
    %v203 = vrot.slane %v202, 1
    %v204 = vmax.f32 %v202, %v203
    %v205 = vsub.f32 %v180, %v190
    %v206 = vsub.f32 %v181, %v197
    %v207 = vsub.f32 %v182, %v204
    %v208 = vmul.f32 %v205, 1.442695
    %v209 = vpow.pop %v208
    %v210 = vmul.f32 %v206, 1.442695
    %v211 = vpow.pop %v210
    %v212 = vmul.f32 %v207, 1.442695
    %v213 = vpow.pop %v212
    %215 = vset.pattern.permute.xlu0 0
    %216 = vperm.xlu0 %215, %v33
    %v217 = vpop.permute.xlu0 %216
    %v219 = vmul.f32 %v217, %v209
    %v220 = vmul.f32 %v217, %v211
    %v221 = vmul.f32 %v217, %v213
    %v222 = vsel %vm183, %v219, 0.0
    %v223 = vrot.slane %v222, 4
    %v224 = vadd.f32 %v222, %v223
    %v225 = vrot.slane %v224, 2
    %v226 = vadd.f32 %v224, %v225
    %v227 = vrot.slane %v226, 1
    %v228 = vadd.f32 %v226, %v227
    %v229 = vsel %vm183, %v220, 0.0
    %v230 = vrot.slane %v229, 4
    %v231 = vadd.f32 %v229, %v230
    %v232 = vrot.slane %v231, 2
    %v233 = vadd.f32 %v231, %v232
    %v234 = vrot.slane %v233, 1
    %v235 = vadd.f32 %v233, %v234
    %v236 = vsel %vm183, %v221, 0.0
    %v237 = vrot.slane %v236, 4
    %v238 = vadd.f32 %v236, %v237
    %v239 = vrot.slane %v238, 2
    %v240 = vadd.f32 %v238, %v239
    %v241 = vrot.slane %v240, 1
    %v242 = vadd.f32 %v240, %v241
    %v243 = vlog2.pop %v228
    %v244 = vmul.f32 %v243, 0.6931472
    %v245 = vlog2.pop %v235
    %v246 = vmul.f32 %v245, 0.6931472
    %v247 = vlog2.pop %v242
    %v248 = vmul.f32 %v247, 0.6931472
    %250 = vset.pattern.permute.xlu0 0
    %251 = vperm.xlu0 %250, %v34
    %v252 = vpop.permute.xlu0 %251
    %v254 = vadd.f32 %v252, %v205
    %v255 = vadd.f32 %v252, %v206
    %v256 = vadd.f32 %v252, %v207
    %v257 = vsub.f32 %v254, %v244
    %v258 = vsub.f32 %v255, %v246
    %v259 = vsub.f32 %v256, %v248
    %260 = vst [vmem:[#allocation5] sm:$0x1f] %v257
    %261 = vst [vmem:[#allocation5 + $0x8] sm:$0x1f] %v258
    %262 = vst [vmem:[#allocation5 + $0x10] sm:$0x1f] %v259
    %263 = vset.pattern.permute.xlu0 1
    %264 = vperm.xlu0 %263, %v33
    %v265 = vpop.permute.xlu0 %264
    %v267 = vmul.f32 %v265, %v209
    %v268 = vmul.f32 %v265, %v211
    %v269 = vmul.f32 %v265, %v213
    %v270 = vsel %vm183, %v267, 0.0
    %v271 = vrot.slane %v270, 4
    %v272 = vadd.f32 %v270, %v271
    %v273 = vrot.slane %v272, 2
    %v274 = vadd.f32 %v272, %v273
    %v275 = vrot.slane %v274, 1
    %v276 = vadd.f32 %v274, %v275
    %v277 = vsel %vm183, %v268, 0.0
    %v278 = vrot.slane %v277, 4
    %v279 = vadd.f32 %v277, %v278
    %v280 = vrot.slane %v279, 2
    %v281 = vadd.f32 %v279, %v280
    %v282 = vrot.slane %v281, 1
    %v283 = vadd.f32 %v281, %v282
    %v284 = vsel %vm183, %v269, 0.0
    %v285 = vrot.slane %v284, 4
    %v286 = vadd.f32 %v284, %v285
    %v287 = vrot.slane %v286, 2
    %v288 = vadd.f32 %v286, %v287
    %v289 = vrot.slane %v288, 1
    %v290 = vadd.f32 %v288, %v289
    %v291 = vlog2.pop %v276
    %v292 = vmul.f32 %v291, 0.6931472
    %v293 = vlog2.pop %v283
    %v294 = vmul.f32 %v293, 0.6931472
    %v295 = vlog2.pop %v290
    %v296 = vmul.f32 %v295, 0.6931472
    %297 = vset.pattern.permute.xlu0 1
    %298 = vperm.xlu0 %297, %v34
    %v299 = vpop.permute.xlu0 %298
    %v301 = vadd.f32 %v299, %v205
    %v302 = vadd.f32 %v299, %v206
    %v303 = vadd.f32 %v299, %v207
    %v304 = vsub.f32 %v301, %v292
    %v305 = vsub.f32 %v302, %v294
    %v306 = vsub.f32 %v303, %v296
    %s307 = scalar_lea.vmem [#allocation5], 24
    %308 = vst [vmem:[%s307] sm:$0x1f] %v304
    %309 = vst [vmem:[%s307 + $0x8] sm:$0x1f] %v305
    %310 = vst [vmem:[%s307 + $0x10] sm:$0x1f] %v306
    %311 = vset.pattern.permute.xlu0 2
    %312 = vperm.xlu0 %311, %v33
    %v313 = vpop.permute.xlu0 %312
    %v315 = vmul.f32 %v313, %v209
    %v316 = vmul.f32 %v313, %v211
    %v317 = vmul.f32 %v313, %v213
    %v318 = vsel %vm183, %v315, 0.0
    %v319 = vrot.slane %v318, 4
    %v320 = vadd.f32 %v318, %v319
    %v321 = vrot.slane %v320, 2
    %v322 = vadd.f32 %v320, %v321
    %v323 = vrot.slane %v322, 1
    %v324 = vadd.f32 %v322, %v323
    %v325 = vsel %vm183, %v316, 0.0
    %v326 = vrot.slane %v325, 4
    %v327 = vadd.f32 %v325, %v326
    %v328 = vrot.slane %v327, 2
    %v329 = vadd.f32 %v327, %v328
    %v330 = vrot.slane %v329, 1
    %v331 = vadd.f32 %v329, %v330
    %v332 = vsel %vm183, %v317, 0.0
    %v333 = vrot.slane %v332, 4
    %v334 = vadd.f32 %v332, %v333
    %v335 = vrot.slane %v334, 2
    %v336 = vadd.f32 %v334, %v335
    %v337 = vrot.slane %v336, 1
    %v338 = vadd.f32 %v336, %v337
    %v339 = vlog2.pop %v324
    %v340 = vmul.f32 %v339, 0.6931472
    %v341 = vlog2.pop %v331
    %v342 = vmul.f32 %v341, 0.6931472
    %v343 = vlog2.pop %v338
    %v344 = vmul.f32 %v343, 0.6931472
    %345 = vset.pattern.permute.xlu0 2
    %346 = vperm.xlu0 %345, %v34
    %v347 = vpop.permute.xlu0 %346
    %v349 = vadd.f32 %v347, %v205
    %v350 = vadd.f32 %v347, %v206
    %v351 = vadd.f32 %v347, %v207
    %v352 = vsub.f32 %v349, %v340
    %v353 = vsub.f32 %v350, %v342
    %v354 = vsub.f32 %v351, %v344
    %s355 = scalar_lea.vmem [#allocation5], 48
    %356 = vst [vmem:[%s355] sm:$0x1f] %v352
    %357 = vst [vmem:[%s355 + $0x8] sm:$0x1f] %v353
    %358 = vst [vmem:[%s355 + $0x10] sm:$0x1f] %v354
    %359 = vset.pattern.permute.xlu0 3
    %360 = vperm.xlu0 %359, %v33
    %v361 = vpop.permute.xlu0 %360
    %v363 = vmul.f32 %v361, %v209
    %v364 = vmul.f32 %v361, %v211
    %v365 = vmul.f32 %v361, %v213
    %v366 = vsel %vm183, %v363, 0.0
    %v367 = vrot.slane %v366, 4
    %v368 = vadd.f32 %v366, %v367
    %v369 = vrot.slane %v368, 2
    %v370 = vadd.f32 %v368, %v369
    %v371 = vrot.slane %v370, 1
    %v372 = vadd.f32 %v370, %v371
    %v373 = vsel %vm183, %v364, 0.0
    %v374 = vrot.slane %v373, 4
    %v375 = vadd.f32 %v373, %v374
    %v376 = vrot.slane %v375, 2
    %v377 = vadd.f32 %v375, %v376
    %v378 = vrot.slane %v377, 1
    %v379 = vadd.f32 %v377, %v378
    %v380 = vsel %vm183, %v365, 0.0
    %v381 = vrot.slane %v380, 4
    %v382 = vadd.f32 %v380, %v381
    %v383 = vrot.slane %v382, 2
    %v384 = vadd.f32 %v382, %v383
    %v385 = vrot.slane %v384, 1
    %v386 = vadd.f32 %v384, %v385
    %v387 = vlog2.pop %v372
    %v388 = vmul.f32 %v387, 0.6931472
    %v389 = vlog2.pop %v379
    %v390 = vmul.f32 %v389, 0.6931472
    %v391 = vlog2.pop %v386
    %v392 = vmul.f32 %v391, 0.6931472
    %393 = vset.pattern.permute.xlu0 3
    %394 = vperm.xlu0 %393, %v34
    %v395 = vpop.permute.xlu0 %394
    %v397 = vadd.f32 %v395, %v205
    %v398 = vadd.f32 %v395, %v206
    %v399 = vadd.f32 %v395, %v207
    %v400 = vsub.f32 %v397, %v388
    %v401 = vsub.f32 %v398, %v390
    %v402 = vsub.f32 %v399, %v392
    %s403 = scalar_lea.vmem [#allocation5], 72
    %404 = vst [vmem:[%s403] sm:$0x1f] %v400
    %405 = vst [vmem:[%s403 + $0x8] sm:$0x1f] %v401
    %406 = vst [vmem:[%s403 + $0x10] sm:$0x1f] %v402
    %407 = vset.pattern.permute.xlu0 4
    %408 = vperm.xlu0 %407, %v33
    %v409 = vpop.permute.xlu0 %408
    %v411 = vmul.f32 %v409, %v209
    %v412 = vmul.f32 %v409, %v211
    %v413 = vmul.f32 %v409, %v213
    %v414 = vsel %vm183, %v411, 0.0
    %v415 = vrot.slane %v414, 4
    %v416 = vadd.f32 %v414, %v415
    %v417 = vrot.slane %v416, 2
    %v418 = vadd.f32 %v416, %v417
    %v419 = vrot.slane %v418, 1
    %v420 = vadd.f32 %v418, %v419
    %v421 = vsel %vm183, %v412, 0.0
    %v422 = vrot.slane %v421, 4
    %v423 = vadd.f32 %v421, %v422
    %v424 = vrot.slane %v423, 2
    %v425 = vadd.f32 %v423, %v424
    %v426 = vrot.slane %v425, 1
    %v427 = vadd.f32 %v425, %v426
    %v428 = vsel %vm183, %v413, 0.0
    %v429 = vrot.slane %v428, 4
    %v430 = vadd.f32 %v428, %v429
    %v431 = vrot.slane %v430, 2
    %v432 = vadd.f32 %v430, %v431
    %v433 = vrot.slane %v432, 1
    %v434 = vadd.f32 %v432, %v433
    %v435 = vlog2.pop %v420
    %v436 = vmul.f32 %v435, 0.6931472
    %v437 = vlog2.pop %v427
    %v438 = vmul.f32 %v437, 0.6931472
    %v439 = vlog2.pop %v434
    %v440 = vmul.f32 %v439, 0.6931472
    %441 = vset.pattern.permute.xlu0 4
    %442 = vperm.xlu0 %441, %v34
    %v443 = vpop.permute.xlu0 %442
    %v445 = vadd.f32 %v443, %v205
    %v446 = vadd.f32 %v443, %v206
    %v447 = vadd.f32 %v443, %v207
    %v448 = vsub.f32 %v445, %v436
    %v449 = vsub.f32 %v446, %v438
    %v450 = vsub.f32 %v447, %v440
    %s451 = scalar_lea.vmem [#allocation5], 96
    %452 = vst [vmem:[%s451] sm:$0x1f] %v448
    %453 = vst [vmem:[%s451 + $0x8] sm:$0x1f] %v449
    %454 = vst [vmem:[%s451 + $0x10] sm:$0x1f] %v450
    // Predicated region
    $region22: #{tpu_custom_call.1} parent=1 // pred_check
      _
    $region23: #{tpu_custom_call.1} parent=1 // pred_check_branch
      %456 = sbr.rel (0) target = $region25
    $region24: #{tpu_custom_call.1} parent=1 // pred_region
      %s458 = ssub.s32 1920, 1920
      %459 = vsyncadd [#allocation4], %s458
      %s460 = sshll.u32 [#allocation5], 4
      %s461 = int_to_ptr.vmem [resolvable:$true] %s460
      %466 = dma.vmem_to_hbm [thread:$0]  %s461, 1920, %s4, [#allocation4], 384, 384, 24
    $region25: #{tpu_custom_call.1} parent=1 // pred_fallthru
      _
    // Predicated region
    $region26: #{tpu_custom_call.1} parent=1 // pred_check
      _
    $region27: #{tpu_custom_call.1} parent=1 // pred_check_branch
      %468 = sbr.rel (0) target = $region29
    $region28: #{tpu_custom_call.1} parent=1 // pred_region
      %469 = dma.done [#allocation4], 1920
    $region29: #{tpu_custom_call.1} parent=1 // pred_fallthru
      _
    %470 = vsyncpa [#allocation3], 1
    %471 = vsyncpa [#allocation4], 1

</llo_original>
